<compile_context>
chip_gen: v5e
topology: v5e:2x2
jax: 0.10.0
libtpu: 0.0.40
codegen_flags: <defaults>
</compile_context>

<pallas_src>
import math

import jax
import jax.numpy as jnp
from jax.experimental import pallas as pl
from jax.experimental.pallas import tpu as pltpu


def _zscore_kernel(z_ref, x_ref, o_ref):
    # z_ref: (2, W) — row 0 = mean, row 1 = std; same block every step (resident).
    # x_ref / o_ref: (tm, W) input / output row tiles.
    z = z_ref[...].astype(jnp.float32)
    mean = z[0:1, :]                                   # (1, W)
    inv_std = pl.reciprocal(z[1:2, :], approx=False)   # (1, W) — EUP slot, ~free
    x = x_ref[...].astype(jnp.float32)                 # f32 math even for bf16 inputs
    o_ref[...] = ((x - mean) * inv_std).astype(o_ref.dtype)


def _round_up(x: int, m: int) -> int:
    return ((x + m - 1) // m) * m


def zscore_layer(
    in_feat: jax.Array,
    zscores: jax.Array,
    *,
    target_lane_width: int = 512,   # lane-dense target for the (free) row fold
    max_fold_width: int = 4096,     # don't fold beyond this lane width
    max_tile_bytes: int = 4 << 20,  # ~4 MiB/tile -> ~16 MiB double-buffered in+out
    min_steps: int = 8,             # keep pipeline busy / both v7x cores fed
) -> jax.Array:
    """Zscore normalization: (x - mean) / std, broadcast over frames (rows)."""
    n_frames, n_features = in_feat.shape
    assert zscores.shape == (2, n_features)
    out_dtype = in_feat.dtype
    itemsize = jnp.dtype(out_dtype).itemsize

    # ---- optional row fold: ONLY when free (row-major bitcast, n_frames % k == 0) ----
    k = 1
    lane_aligned = (n_features % 128 == 0)
    if not lane_aligned and n_frames > 1:
        k_req = 128 // math.gcd(n_features, 128)
        if k_req * n_features <= max_fold_width and n_frames % k_req == 0:
            k = k_req
            lane_aligned = True
    if lane_aligned:
        # widen narrow-but-aligned rows toward the lane-dense target (still free)
        while (k * n_features < target_lane_width
               and 2 * k * n_features <= max_fold_width
               and n_frames % (2 * k) == 0):
            k *= 2

    W = k * n_features
    folded_rows = n_frames // k                                   # exact by construction
    x = in_feat.reshape(folded_rows, W) if k > 1 else in_feat     # bitcast, no HBM copy
    zparams = jnp.tile(zscores, (1, k)) if k > 1 else zscores     # tiny (2, W)

    # ---- row tile: within byte budget, but keep >= min_steps (even) grid steps ----
    sub = {4: 8, 2: 16, 1: 32}.get(itemsize, 8)
    rows_budget = max(sub, (max_tile_bytes // max(W * itemsize, 1)) // sub * sub)
    steps = _round_up(max(min_steps, pl.cdiv(folded_rows, rows_budget)), 2)
    tm = min(rows_budget, max(sub, _round_up(pl.cdiv(folded_rows, steps), sub)))
    if tm >= folded_rows:
        tm = folded_rows          # single block: full-extent block dim is always legal
    grid = (pl.cdiv(folded_rows, tm),)   # ragged last block handled by Pallas (masked)

    out = pl.pallas_call(
        _zscore_kernel,
        out_shape=jax.ShapeDtypeStruct((folded_rows, W), out_dtype),
        grid_spec=pltpu.PrefetchScalarGridSpec(
            num_scalar_prefetch=0,
            grid=grid,
            in_specs=[
                # mean/std: same (full) block every step -> stays resident in VMEM
                pl.BlockSpec((2, W), lambda i: (0, 0)),
                # input rows, tiled along the (folded) frame axis
                pl.BlockSpec((tm, W), lambda i: (i, 0)),
            ],
            out_specs=pl.BlockSpec((tm, W), lambda i: (i, 0)),
        ),
        compiler_params=pltpu.CompilerParams(
            dimension_semantics=("parallel",),   # sharded across TensorCores on v7x
            vmem_limit_bytes=32 * 1024 * 1024,   # safe on v7x (64 MiB physical / TC)
        ),
    )(zparams, x)

    return out.reshape(n_frames, n_features) if k > 1 else out


def _ref(in_feat, zscores):
    return (in_feat.astype(jnp.float32) - zscores[0, :].astype(jnp.float32)) / zscores[
        1, :
    ].astype(jnp.float32)


if __name__ == "__main__":
    key = jax.random.PRNGKey(0)
    k_x, k_m, k_s = jax.random.split(key, 3)

    # --- main demo: small shapes matching the module's [n_frames, n_features] ---
    n_frames, n_features = 16, 32
    in_feat = jax.random.normal(k_x, (n_frames, n_features), dtype=jnp.float32) * 3.0 + 1.5
    means = jax.random.normal(k_m, (n_features,), dtype=jnp.float32)
    stds = jax.random.uniform(k_s, (n_features,), dtype=jnp.float32, minval=0.5, maxval=2.0)
    zscores = jnp.stack([means, stds], axis=0)  # [2, n_features]

    out = jax.block_until_ready(zscore_layer(in_feat, zscores))
    ref = _ref(in_feat, zscores)
    assert out.shape == (n_frames, n_features)
    assert jnp.allclose(out, ref, rtol=1e-5, atol=1e-6)

    # --- odd shapes: non-divisible frame count + wide unaligned feature count
    #     (runs natively with a ragged last block, no padding passes) ---
    nf2, nd2 = 13, 1000
    x2 = jax.random.normal(k_x, (nf2, nd2), dtype=jnp.float32) * 2.0 - 0.5
    m2 = jax.random.normal(k_m, (nd2,), dtype=jnp.float32)
    s2 = jax.random.uniform(k_s, (nd2,), dtype=jnp.float32, minval=0.5, maxval=2.0)
    z2 = jnp.stack([m2, s2], axis=0)
    out2 = jax.block_until_ready(zscore_layer(x2, z2))
    assert out2.shape == (nf2, nd2)
    assert jnp.allclose(out2, _ref(x2, z2), rtol=1e-5, atol=1e-6)

    # --- bf16 input: f32 math inside the kernel, bf16 stores ---
    nf3, nd3 = 64, 256
    x3 = (jax.random.normal(k_x, (nf3, nd3), dtype=jnp.float32) * 3.0 + 1.5).astype(jnp.bfloat16)
    m3 = jax.random.normal(k_m, (nd3,), dtype=jnp.float32)
    s3 = jax.random.uniform(k_s, (nd3,), dtype=jnp.float32, minval=0.5, maxval=2.0)
    z3 = jnp.stack([m3, s3], axis=0)
    out3 = jax.block_until_ready(zscore_layer(x3, z3))
    assert out3.shape == (nf3, nd3)
    assert jnp.allclose(out3.astype(jnp.float32), _ref(x3, z3), rtol=2e-2, atol=2e-2)

    print("KERNEL_OK")
</pallas_src>

<mosaic_0001>
module attributes {stable_mosaic.version = 11 : i64} {
  func.func @_zscore_kernel(%arg0: i32, %arg1: memref<2x512xf32, #tpu.memory_space<vmem>>, %arg2: memref<1x512xf32, #tpu.memory_space<vmem>>, %arg3: memref<1x512xf32, #tpu.memory_space<vmem>>) attributes {dimension_semantics = [#tpu.dimension_semantics<parallel>], iteration_bounds = array<i64: 1>, scalar_prefetch = 0 : i64, scratch_operands = 0 : i64, tpu.core_type = #tpu.core_type<tc>, window_params = [{pipeline_mode = #tpu.pipeline_mode<synchronous>, transform_indices = @transform_0, window_bounds = array<i64: 2, 512>}, {transform_indices = @transform_1, window_bounds = array<i64: 1, 512>}, {transform_indices = @transform_2, window_bounds = array<i64: 1, 512>}]} {
    %c0 = arith.constant 0 : index
    %c0_0 = arith.constant 0 : index
    %0 = vector.load %arg1[%c0, %c0_0] : memref<2x512xf32, #tpu.memory_space<vmem>>, vector<2x512xf32>
    %1 = vector.extract_strided_slice %0 {offsets = [0, 0], sizes = [1, 512], strides = [1, 1]} : vector<2x512xf32> to vector<1x512xf32>
    %2 = vector.extract_strided_slice %0 {offsets = [1, 0], sizes = [1, 512], strides = [1, 1]} : vector<2x512xf32> to vector<1x512xf32>
    %3 = tpu.reciprocal %2 : vector<1x512xf32> -> vector<1x512xf32>
    %c0_1 = arith.constant 0 : index
    %c0_2 = arith.constant 0 : index
    %4 = vector.load %arg2[%c0_1, %c0_2] : memref<1x512xf32, #tpu.memory_space<vmem>>, vector<1x512xf32>
    %5 = arith.subf %4, %1 : vector<1x512xf32>
    %6 = arith.mulf %5, %3 : vector<1x512xf32>
    %c0_3 = arith.constant 0 : index
    %c0_4 = arith.constant 0 : index
    %7 = vector.load %arg3[%c0_3, %c0_4] : memref<1x512xf32, #tpu.memory_space<vmem>>, vector<1x512xf32>
    tpu.vector_store %arg3[%c0_3, %c0_4], %6 {strides = array<i32>} : memref<1x512xf32, #tpu.memory_space<vmem>>, vector<1x512xf32>,
    return
  }
  func.func @transform_0(%arg0: i32) -> (i32, i32) {
    %c0_i32 = arith.constant 0 : i32
    %c0_i32_0 = arith.constant 0 : i32
    %c0_i32_1 = arith.constant 0 : i32
    return %c0_i32, %c0_i32_0 : i32, i32
  }
  func.func @transform_1(%arg0: i32) -> (i32, i32) {
    %c0_i32 = arith.constant 0 : i32
    %c0_i32_0 = arith.constant 0 : i32
    return %arg0, %c0_i32 : i32, i32
  }
  func.func @transform_2(%arg0: i32) -> (i32, i32) {
    %c0_i32 = arith.constant 0 : i32
    %c0_i32_0 = arith.constant 0 : i32
    return %arg0, %c0_i32 : i32, i32
  }
}

</mosaic_0001>

<llo_original>
// kernel: tpu_custom_call.1
$region0: #{tpu_custom_call.1}
  #allocation0 [shape = 'u32[]', space=smem, size = 0x4, offset = 0x4, fixed_abs, tag = 'smem constant byte address 0x4 - core index']
  #allocation1 [shape = 'u32[72,128]{1,0:T(1,128)}', space=vmem, size = 0x9000, scoped, tag = 'internal scratch']
  %s0 = inlined_call_operand.hbm [shape: f32[2,512], index: 0, kind: input, shape index: {}]
  %s1 = inlined_call_operand.hbm [shape: f32[1,512], index: 1, kind: input, shape index: {}]
  %s2 = inlined_call_operand.hbm [shape: f32[1,512], index: 2, kind: output, shape index: {}]
  %s3 = sld [smem:[#allocation0]]
  $region26: #{tpu_custom_call.1} parent=0
    _
  %s5 = ssub.s32 1, %s3
  %s6 = scalar_select 0, %s5, %s3
  $region1: #{tpu_custom_call.1} parent=0
    #allocation2 [shape = 'u8[4096]{0}', space=vmem, size = 0x1000, scoped, tag = 'input window, operand 0, single buffered']
    #allocation3 [shape = 's32[1]{0}', space=sflag, size = 0x4, scoped, tag = 'scoped memory for tpu_custom_call.1']
    #allocation4 [shape = 's32[1]{0}', space=sflag, size = 0x4, scoped, tag = 'scoped memory for tpu_custom_call.1']
    #allocation5 [shape = 'u8[2048]{0}', space=vmem, size = 0x800, scoped, tag = 'input window, operand 1, single buffered']
    #allocation6 [shape = 's32[1]{0}', space=sflag, size = 0x4, scoped, tag = 'scoped memory for tpu_custom_call.1']
    #allocation7 [shape = 'u8[2048]{0}', space=vmem, size = 0x800, scoped, tag = 'output window, operand 0, single buffered']
    %7 = vsyncpa [#allocation3], 0
    %8 = vsyncpa [#allocation6], 0
    %9 = vsyncpa [#allocation4], 0
    // Predicated region
    $region2: #{tpu_custom_call.1} parent=1 // pred_check
      _
    $region3: #{tpu_custom_call.1} parent=1 // pred_check_branch
      %11 = sbr.rel (0) target = $region5
    $region4: #{tpu_custom_call.1} parent=1 // pred_region
      %13 = vsyncadd [#allocation3], 0
      %s15 = sshll.u32 %s0, 4
      %s16 = int_to_ptr.hbm [resolvable:$true] %s15
      %s17 = sshll.u32 [#allocation2], 4
      %s18 = int_to_ptr.vmem [resolvable:$true] %s17
      %20 = dma.hbm_to_vmem [thread:$0]  %s16, 128, %s18, [#allocation3]
    $region5: #{tpu_custom_call.1} parent=1 // pred_fallthru
      _
    // Predicated region
    $region6: #{tpu_custom_call.1} parent=1 // pred_check
      _
    $region7: #{tpu_custom_call.1} parent=1 // pred_check_branch
      %22 = sbr.rel (0) target = $region9
    $region8: #{tpu_custom_call.1} parent=1 // pred_region
      %24 = vsyncadd [#allocation6], 0
      %s26 = sshll.u32 %s1, 4
      %s27 = int_to_ptr.hbm [resolvable:$true] %s26
      %s28 = sshll.u32 [#allocation5], 4
      %s29 = int_to_ptr.vmem [resolvable:$true] %s28
      %31 = dma.hbm_to_vmem [thread:$0]  %s27, 64, %s29, [#allocation6]
    $region9: #{tpu_custom_call.1} parent=1 // pred_fallthru
      _
    // Predicated region
    $region10: #{tpu_custom_call.1} parent=1 // pred_check
      _
    $region11: #{tpu_custom_call.1} parent=1 // pred_check_branch
      %33 = sbr.rel (0) target = $region13
    $region12: #{tpu_custom_call.1} parent=1 // pred_region
      %35 = dma.done [#allocation3], 128
    $region13: #{tpu_custom_call.1} parent=1 // pred_fallthru
      _
    // Predicated region
    $region14: #{tpu_custom_call.1} parent=1 // pred_check
      _
    $region15: #{tpu_custom_call.1} parent=1 // pred_check_branch
      %37 = sbr.rel (0) target = $region17
    $region16: #{tpu_custom_call.1} parent=1 // pred_region
      %39 = dma.done [#allocation6], 64
    $region17: #{tpu_custom_call.1} parent=1 // pred_fallthru
      _
    %v40 = vld [vmem:[#allocation2] sm:$0xff]
    %v41 = vrcp.pop %v40
    %v42 = vmul.f32 %v40, %v41
    %v43 = vsub.f32 1.0, %v42
    %v44 = vmul.f32 %v41, %v43
    %v45 = vadd.f32 %v41, %v44
    %vm46 = vweird.f32 %v40
    %vm47 = vweird.f32 %v41
    %vm48 = vmor %vm46, %vm47
    %v49 = vsel %vm48, %v41, %v45
    %v50 = vand.u32 2147483647, %v40
    %vm51 = vcmp.eq.f32.partialorder %v50, 8.507059e+37
    %v52 = vand.u32 %v40, 2147483648
    %v53 = vor.u32 1.1754944e-38, %v52
    %v54 = vsel %vm51, %v53, %v49
    %v55 = vld [vmem:[#allocation5] sm:$0xf]
    %v57 = vrot.slane %v40, 1
    %v58 = vrot.slane %v40, 2
    %v59 = vrot.slane %v40, 3
    %vm60 = vcmask 1040384
    %v61 = vsel %vm60, %v40, %v57
    %vm62 = vcmask 1042434
    %v63 = vsel %vm62, %v58, %v59
    %vm64 = vcmask 1041408
    %v65 = vsel %vm64, %v61, %v63
    %v67 = vsub.f32 %v55, %v65
    %69 = vst [vmem:[#allocation1] sm:$0xff] %v54
    %s70 = scalar_lea.vmem [#allocation1], 1
    %v71 = vld [vmem:[%s70] ss:$2 sm:$0xff]
    %v73 = vmul.f32 %v67, %v71
    %v74 = vlaneseq
    %vm75 = vcmp.ge.s32.totalorder %v74, 0
    %vm76 = vcmp.lt.s32.totalorder %v74, 512
    %vm77 = vmand %vm75, %vm76
    %78 = vst.msk [vmem:[#allocation7] sm:$0xf] %vm77, %v73
    // Predicated region
    $region18: #{tpu_custom_call.1} parent=1 // pred_check
      _
    $region19: #{tpu_custom_call.1} parent=1 // pred_check_branch
      %80 = sbr.rel (0) target = $region21
    $region20: #{tpu_custom_call.1} parent=1 // pred_region
      %82 = vsyncadd [#allocation4], 0
      %s84 = sshll.u32 [#allocation7], 4
      %s85 = int_to_ptr.vmem [resolvable:$true] %s84
      %s86 = sshll.u32 %s2, 4
      %s87 = int_to_ptr.hbm [resolvable:$true] %s86
      %89 = dma.vmem_to_hbm [thread:$0]  %s85, 64, %s87, [#allocation4]
    $region21: #{tpu_custom_call.1} parent=1 // pred_fallthru
      _
    // Predicated region
    $region22: #{tpu_custom_call.1} parent=1 // pred_check
      _
    $region23: #{tpu_custom_call.1} parent=1 // pred_check_branch
      %91 = sbr.rel (0) target = $region25
    $region24: #{tpu_custom_call.1} parent=1 // pred_region
      %93 = dma.done [#allocation4], 64
    $region25: #{tpu_custom_call.1} parent=1 // pred_fallthru
      _
    %94 = vsyncpa [#allocation3], 1
    %95 = vsyncpa [#allocation6], 1
    %96 = vsyncpa [#allocation4], 1

</llo_original>
